<compile_context>
chip_gen: v7x
topology: tpu7x:2x2x1
jax: 0.10.0
libtpu: 0.0.40
codegen_flags: <defaults>
</compile_context>

<pallas_src>
import jax
import jax.numpy as jnp
from jax.experimental import pallas as pl
from jax.experimental.pallas import tpu as pltpu


def _hbm_copy_kernel(x_hbm, o_hbm, sem):
    # Single HBM -> HBM DMA of the full array. No VMEM staging, no grid.
    cp = pltpu.make_async_copy(x_hbm, o_hbm, sem)
    cp.start()
    cp.wait()


def dummy_input_layer_norm(x, weight=None, bias=None):
    """Identity forward of DummyInputLayerNorm.

    weight / bias are accepted (matching the nn.Module __init__ signature)
    but unused, exactly like the PyTorch forward. No kernel is launched:
    returning x moves zero bytes, which is the true cost of `return x`.
    """
    del weight, bias
    return x


def dummy_input_layer_norm_copy(x, weight=None, bias=None):
    """Materialized identity (fresh, distinct output buffer).

    Implemented as one HBM->HBM DMA inside a Pallas kernel: one read + one
    write of x.nbytes, which is the bandwidth floor for a materializing copy.
    Only needed when a caller requires a distinct output buffer; otherwise
    use `dummy_input_layer_norm`, which is free.
    """
    del weight, bias
    if x.size == 0:
        return jnp.copy(x)

    return pl.pallas_call(
        _hbm_copy_kernel,
        out_shape=jax.ShapeDtypeStruct(x.shape, x.dtype),
        grid_spec=pltpu.PrefetchScalarGridSpec(
            num_scalar_prefetch=0,
            grid=(),
            in_specs=[pl.BlockSpec(memory_space=pl.ANY)],
            out_specs=pl.BlockSpec(memory_space=pl.ANY),
            scratch_shapes=[pltpu.SemaphoreType.DMA(())],
        ),
        cost_estimate=pl.CostEstimate(
            flops=0,
            transcendentals=0,
            bytes_accessed=2 * x.size * jnp.dtype(x.dtype).itemsize,
        ),
    )(x)


if __name__ == "__main__":
    key = jax.random.PRNGKey(0)
    kx, kw, kb, ky, kz = jax.random.split(key, 5)

    # Case 1: typical hidden-state shape (batch=2, seq=8, hidden=32), f32.
    batch, seq, hidden = 2, 8, 32
    x = jax.random.normal(kx, (batch, seq, hidden), dtype=jnp.float32)
    weight = jax.random.normal(kw, (hidden,), dtype=jnp.float32)
    bias = jax.random.normal(kb, (hidden,), dtype=jnp.float32)

    # Fast path: exact PyTorch semantics, zero data movement.
    out_fast = dummy_input_layer_norm(x, weight, bias)
    assert out_fast is x, "fast path must return the input unchanged"

    # Materialized copy path (single HBM->HBM DMA).
    out_copy = jax.block_until_ready(dummy_input_layer_norm_copy(x, weight, bias))
    assert out_copy.shape == x.shape and out_copy.dtype == x.dtype
    assert jnp.array_equal(out_copy, x), "identity copy mismatch (f32)"

    # Case 2: bf16 with an awkward, unaligned shape (5, 96).
    y = jax.random.normal(ky, (5, 96), dtype=jnp.bfloat16)
    out_y = jax.block_until_ready(dummy_input_layer_norm_copy(y))
    assert out_y.shape == y.shape and out_y.dtype == y.dtype
    assert jnp.array_equal(out_y, y), "identity copy mismatch (bf16)"

    # Case 3: 1-D vector.
    z = jax.random.normal(kz, (123,), dtype=jnp.float32)
    out_z = jax.block_until_ready(dummy_input_layer_norm_copy(z))
    assert out_z.shape == z.shape and out_z.dtype == z.dtype
    assert jnp.array_equal(out_z, z), "identity copy mismatch (1-D)"

    print("KERNEL_OK")
</pallas_src>

<mosaic_0001>
module attributes {stable_mosaic.version = 11 : i64} {
  func.func @_hbm_copy_kernel(%arg0: memref<2x8x32xf32, #tpu.memory_space<any>>, %arg1: memref<2x8x32xf32, #tpu.memory_space<any>>, %arg2: memref<!tpu.dma_semaphore, #tpu.memory_space<semaphore_mem>>) attributes {dimension_semantics = [], scalar_prefetch = 0 : i64, scratch_operands = 1 : i64, tpu.core_type = #tpu.core_type<tc>} {
    tpu.enqueue_dma source(%arg0 : memref<2x8x32xf32, #tpu.memory_space<any>>) target(%arg1 : memref<2x8x32xf32, #tpu.memory_space<any>>) target_semaphore(%arg2 : memref<!tpu.dma_semaphore, #tpu.memory_space<semaphore_mem>>)
    tpu.wait_dma2 semaphore(%arg2 : memref<!tpu.dma_semaphore, #tpu.memory_space<semaphore_mem>>) src(%arg0 : memref<2x8x32xf32, #tpu.memory_space<any>>) dst(%arg1 : memref<2x8x32xf32, #tpu.memory_space<any>>)
    return
  }
}

</mosaic_0001>

<llo_original>
// kernel: tpu_custom_call.1
$region0: #{tpu_custom_call.1}
  #allocation0 [shape = 'u32[]', space=smem, size = 0x4, offset = 0x4, fixed_abs, tag = 'smem constant byte address 0x4 - core index']
  #allocation1 [shape = 'u32[144,128]{1,0:T(1,128)}', space=vmem, size = 0x12000, scoped, tag = 'internal scratch']
  #allocation2 [shape = 's32[1]{0}', space=sflag, size = 0x4, scoped, tag = 'scratch operand']
  #allocation3 [shape = 's32[]', space=sflag, size = 0x4, offset = 0, fixed_abs, tag = 'sflag constant byte address 0x0 - dummy sync flag']
  #allocation4 [shape = 'u32[0]{0}', space=smem, size = 0, offset = 0, fixed_abs, tag = 'smem constant byte address 0x0 - null']
  %s0 = inlined_call_operand.hbm [shape: f32[2,8,32], index: 0, kind: input, shape index: {}]
  %s1 = inlined_call_operand.hbm [shape: f32[2,8,32], index: 1, kind: output, shape index: {}]
  %s2 = sld [smem:[#allocation0]]
  $region2: #{tpu_custom_call.1} parent=0
    _
  %s4 = ssub.s32 1, %s2
  %s5 = scalar_select 0, %s4, %s2
  %s7 = sshll.u32 1, 14
  %s8 = sxor.u32 4294967295, %s7
  %s11 = sshll.u32 3, 24
  %s12 = sxor.u32 4294967295, %s11
  %s13 = sand.u32 0, %s12
  %s15 = sor.u32 %s13, 0
  %18 = dma.general %s0, 256, %s1, [#allocation2], [#allocation3], [#allocation4], %s15, 0
  %s19 = smul.u32 2, 8
  %s20 = smul.u32 %s19, 1
  %s21 = sshll.u32 %s20, 4
  %22 = dma.done [#allocation2], %s21
  %23 = vsyncmov [#allocation2]
  %s24 = vpop.sfrf %23
  %p25 = scmp.eq.s32.totalorder %s24, 0
  %p26 = pneg %p25
  %28 = shalt.err (%p26)

</llo_original>
